<compile_context>
chip_gen: v6e
topology: v6e:2x2x1
jax: 0.10.0
libtpu: 0.0.40
codegen_flags: <defaults>
</compile_context>

<pallas_src>
import functools

import jax
import jax.numpy as jnp
from jax.experimental import pallas as pl
from jax.experimental.pallas import tpu as pltpu


def sppf_kernel(x_ref, o_ref, *, w):
    # x_ref block: (1, bc, HW) -- bc channel images of one batch element, each image
    #              flattened row-major (H rows of W) onto the lane axis.
    # o_ref block: (1, 4, bc, HW) -- [x, pool(x), pool^2(x), pool^3(x)].
    x = x_ref[0]                                   # (bc, HW), input dtype
    _, hw = x.shape
    xf = x.astype(jnp.float32)                     # f32 compute (no-op for f32 inputs)

    neg = jnp.float32(-jnp.inf)

    # Lane-only validity masks, (1, HW)-shaped, shared by every tap of all 3 pools.
    col = jax.lax.broadcasted_iota(jnp.int32, (1, hw), 1)
    cw = col % w                                   # column within the image row
    offs = (-2, -1, 1, 2)
    # roll(v, s, axis)[i] = v[(i - s) mod dim]  =>  s = (-d) % dim gives v[i + d].
    w_taps = [(((-d) % hw), (cw + d >= 0) & (cw + d < w)) for d in offs]
    h_taps = [(((-d * w) % hw), (col + d * w >= 0) & (col + d * w < hw)) for d in offs]

    def pool(v):
        # 1x5 max along W: lane rolls by +-1/+-2, -inf outside the image row.
        r = v
        for s, m in w_taps:
            r = jnp.maximum(r, jnp.where(m, pltpu.roll(v, s, axis=1), neg))
        # 5x1 max along H: lane rolls by +-W/+-2W, -inf outside the image.
        out = r
        for s, m in h_taps:
            out = jnp.maximum(out, jnp.where(m, pltpu.roll(r, s, axis=1), neg))
        return out

    o1 = pool(xf)
    o2 = pool(o1)
    o3 = pool(o2)

    dt = o_ref.dtype
    o_ref[0, 0] = x                                # fused concat: group 0 is pass-through
    o_ref[0, 1] = o1.astype(dt)
    o_ref[0, 2] = o2.astype(dt)
    o_ref[0, 3] = o3.astype(dt)


def _vmem_budget_bytes():
    """Conservative per-step VMEM budget, derived from the device when possible."""
    try:
        cap = pltpu.get_tpu_info().vmem_capacity_bytes   # 64 MiB v7x, 128 MiB v5e/v6e
    except Exception:
        cap = 64 << 20
    return int(min(24 << 20, cap // 3))


def _pick_channel_block(N, C, HW, itemsize, budget_bytes):
    """Channels per grid step, from an honest footprint model.

    Per channel per step:
      * double-buffered pipeline buffers, 1 input + 4 output planes -> 10 * itemsize
      * live f32 temporaries inside the kernel (~8 planes)          ->  8 * 4
    The block is capped so the grid keeps >= ~4 steps (megacore + DMA overlap) and the
    sublane block dim is either the full C or a multiple of 8.
    """
    per_channel = 10 * HW * itemsize + 8 * HW * 4
    max_bc = max(1, budget_bytes // per_channel)
    want_cb = max(1, -(-4 // N))            # ceil(4 / N) channel-blocks wanted
    bc = min(max_bc, -(-C // want_cb))      # ceil(C / want_cb)
    if bc >= C:
        return C
    if bc >= 8:
        return (bc // 8) * 8
    # Tiny C / huge HW corner: prefer the aligned full-channel block if it still fits
    # comfortably; otherwise accept a small (possibly relayouted) block.
    return C if C * per_channel <= 2 * budget_bytes else max(1, bc)


def sppf(x):
    """x: (N, C, H, W) float -> (N, 4*C, H, W) = concat([x, p(x), p^2(x), p^3(x)], dim=1)."""
    assert jnp.issubdtype(x.dtype, jnp.floating), "SPPF kernel expects a floating dtype"
    N, C, H, W = x.shape
    HW = H * W

    bc = _pick_channel_block(N, C, HW, x.dtype.itemsize, _vmem_budget_bytes())
    n_cb = pl.cdiv(C, bc)

    # Flatten H*W onto the lane axis; contiguous reshape, no data movement.
    xf = x.reshape(N, C, HW)

    in_spec = pl.BlockSpec((1, bc, HW), lambda n, cb: (n, cb, 0))
    out_spec = pl.BlockSpec((1, 4, bc, HW), lambda n, cb: (n, 0, cb, 0))

    # Explicit VMEM limit: pipeline buffers + f32 temporaries + headroom.
    vmem_needed = 10 * bc * HW * x.dtype.itemsize + 8 * bc * HW * 4 + (2 << 20)
    vmem_limit = int(min(max(vmem_needed, 16 << 20), 48 << 20))

    out = pl.pallas_call(
        functools.partial(sppf_kernel, w=W),
        out_shape=jax.ShapeDtypeStruct((N, 4, C, HW), x.dtype),
        grid_spec=pltpu.PrefetchScalarGridSpec(
            num_scalar_prefetch=0,
            grid=(N, n_cb),
            in_specs=[in_spec],
            out_specs=out_spec,
        ),
        compiler_params=pltpu.CompilerParams(
            dimension_semantics=("parallel", "parallel"),
            vmem_limit_bytes=vmem_limit,
        ),
    )(xf)

    # (N, 4, C, H*W) -> (N, 4C, H, W): contiguous reinterpretation, channel order
    # [x | o1 | o2 | o3] identical to torch.cat(dim=1).
    return out.reshape(N, 4 * C, H, W)


def _ref_sppf(x):
    """Pure-JAX reference (lax.reduce_window) for correctness checking."""
    def pool(v):
        return jax.lax.reduce_window(
            v, -jnp.inf, jax.lax.max,
            window_dimensions=(1, 1, 5, 5),
            window_strides=(1, 1, 1, 1),
            padding=[(0, 0), (0, 0), (2, 2), (2, 2)],
        )
    o1 = pool(x)
    o2 = pool(o1)
    o3 = pool(o2)
    return jnp.concatenate([x, o1, o2, o3], axis=1)


if __name__ == "__main__":
    key = jax.random.PRNGKey(0)
    # Small NCHW input consistent with the module's forward.
    x = jax.random.normal(key, (2, 4, 16, 16), dtype=jnp.float32)

    out = sppf(x)
    jax.block_until_ready(out)

    assert out.shape == (2, 16, 16, 16), out.shape
    ref = _ref_sppf(x)
    assert jnp.allclose(out, ref), "Pallas SPPF output mismatch vs reference"

    print("KERNEL_OK")
</pallas_src>

<mosaic_0001>
module attributes {stable_mosaic.version = 11 : i64} {
  func.func @sppf_kernel(%arg0: i32, %arg1: i32, %arg2: memref<1x4x256xf32, #tpu.memory_space<vmem>>, %arg3: memref<1x4x4x256xf32, #tpu.memory_space<vmem>>) attributes {dimension_semantics = [#tpu.dimension_semantics<parallel>, #tpu.dimension_semantics<parallel>], iteration_bounds = array<i64: 2, 1>, scalar_prefetch = 0 : i64, scratch_operands = 0 : i64, tpu.core_type = #tpu.core_type<tc>, window_params = [{transform_indices = @transform_0, window_bounds = array<i64: 1, 4, 256>}, {transform_indices = @transform_1, window_bounds = array<i64: 1, 4, 4, 256>}]} {
    %c0 = arith.constant 0 : index
    %c0_0 = arith.constant 0 : index
    %c0_1 = arith.constant 0 : index
    %0 = vector.load %arg2[%c0, %c0_0, %c0_1] : memref<1x4x256xf32, #tpu.memory_space<vmem>>, vector<1x4x256xf32>
    %1 = vector.shape_cast %0 : vector<1x4x256xf32> to vector<4x256xf32>
    %2 = tpu.iota {dimensions = array<i32: 1>} : vector<1x256xi32>
    %c16_i32 = arith.constant 16 : i32
    %c0_i32 = arith.constant 0 : i32
    %3 = arith.cmpi eq, %c16_i32, %c0_i32 : i32
    %c1_i32 = arith.constant 1 : i32
    %4 = arith.select %3, %c1_i32, %c16_i32 : i32
    %5 = vector.broadcast %4 : i32 to vector<1x256xi32>
    %6 = arith.remsi %2, %5 : vector<1x256xi32>
    %c0_i32_2 = arith.constant 0 : i32
    %7 = vector.broadcast %c0_i32_2 : i32 to vector<1x256xi32>
    %8 = arith.cmpi ne, %6, %7 : vector<1x256xi32>
    %c0_i32_3 = arith.constant 0 : i32
    %9 = vector.broadcast %c0_i32_3 : i32 to vector<1x256xi32>
    %10 = arith.cmpi slt, %6, %9 : vector<1x256xi32>
    %c0_i32_4 = arith.constant 0 : i32
    %11 = arith.cmpi slt, %4, %c0_i32_4 : i32
    %12 = vector.broadcast %11 : i1 to vector<1x256xi1>
    %13 = vector.broadcast %12 : vector<1x256xi1> to vector<1x256xi1>
    %14 = arith.xori %10, %13 : vector<1x256xi1>
    %15 = arith.andi %14, %8 : vector<1x256xi1>
    %16 = vector.broadcast %4 : i32 to vector<1x256xi32>
    %17 = arith.addi %6, %16 : vector<1x256xi32>
    %18 = arith.select %15, %17, %6 : vector<1x256xi1>, vector<1x256xi32>
    %c-2_i32 = arith.constant -2 : i32
    %19 = vector.broadcast %c-2_i32 : i32 to vector<1x256xi32>
    %20 = arith.addi %18, %19 : vector<1x256xi32>
    %c0_i32_5 = arith.constant 0 : i32
    %21 = vector.broadcast %c0_i32_5 : i32 to vector<1x256xi32>
    %22 = arith.cmpi sge, %20, %21 : vector<1x256xi32>
    %c-2_i32_6 = arith.constant -2 : i32
    %23 = vector.broadcast %c-2_i32_6 : i32 to vector<1x256xi32>
    %24 = arith.addi %18, %23 : vector<1x256xi32>
    %c16_i32_7 = arith.constant 16 : i32
    %25 = vector.broadcast %c16_i32_7 : i32 to vector<1x256xi32>
    %26 = arith.cmpi slt, %24, %25 : vector<1x256xi32>
    %27 = arith.andi %22, %26 : vector<1x256xi1>
    %c-1_i32 = arith.constant -1 : i32
    %28 = vector.broadcast %c-1_i32 : i32 to vector<1x256xi32>
    %29 = arith.addi %18, %28 : vector<1x256xi32>
    %c0_i32_8 = arith.constant 0 : i32
    %30 = vector.broadcast %c0_i32_8 : i32 to vector<1x256xi32>
    %31 = arith.cmpi sge, %29, %30 : vector<1x256xi32>
    %c-1_i32_9 = arith.constant -1 : i32
    %32 = vector.broadcast %c-1_i32_9 : i32 to vector<1x256xi32>
    %33 = arith.addi %18, %32 : vector<1x256xi32>
    %c16_i32_10 = arith.constant 16 : i32
    %34 = vector.broadcast %c16_i32_10 : i32 to vector<1x256xi32>
    %35 = arith.cmpi slt, %33, %34 : vector<1x256xi32>
    %36 = arith.andi %31, %35 : vector<1x256xi1>
    %c1_i32_11 = arith.constant 1 : i32
    %37 = vector.broadcast %c1_i32_11 : i32 to vector<1x256xi32>
    %38 = arith.addi %18, %37 : vector<1x256xi32>
    %c0_i32_12 = arith.constant 0 : i32
    %39 = vector.broadcast %c0_i32_12 : i32 to vector<1x256xi32>
    %40 = arith.cmpi sge, %38, %39 : vector<1x256xi32>
    %c1_i32_13 = arith.constant 1 : i32
    %41 = vector.broadcast %c1_i32_13 : i32 to vector<1x256xi32>
    %42 = arith.addi %18, %41 : vector<1x256xi32>
    %c16_i32_14 = arith.constant 16 : i32
    %43 = vector.broadcast %c16_i32_14 : i32 to vector<1x256xi32>
    %44 = arith.cmpi slt, %42, %43 : vector<1x256xi32>
    %45 = arith.andi %40, %44 : vector<1x256xi1>
    %c2_i32 = arith.constant 2 : i32
    %46 = vector.broadcast %c2_i32 : i32 to vector<1x256xi32>
    %47 = arith.addi %18, %46 : vector<1x256xi32>
    %c0_i32_15 = arith.constant 0 : i32
    %48 = vector.broadcast %c0_i32_15 : i32 to vector<1x256xi32>
    %49 = arith.cmpi sge, %47, %48 : vector<1x256xi32>
    %c2_i32_16 = arith.constant 2 : i32
    %50 = vector.broadcast %c2_i32_16 : i32 to vector<1x256xi32>
    %51 = arith.addi %18, %50 : vector<1x256xi32>
    %c16_i32_17 = arith.constant 16 : i32
    %52 = vector.broadcast %c16_i32_17 : i32 to vector<1x256xi32>
    %53 = arith.cmpi slt, %51, %52 : vector<1x256xi32>
    %54 = arith.andi %49, %53 : vector<1x256xi1>
    %c-32_i32 = arith.constant -32 : i32
    %55 = vector.broadcast %c-32_i32 : i32 to vector<1x256xi32>
    %56 = arith.addi %2, %55 : vector<1x256xi32>
    %c0_i32_18 = arith.constant 0 : i32
    %57 = vector.broadcast %c0_i32_18 : i32 to vector<1x256xi32>
    %58 = arith.cmpi sge, %56, %57 : vector<1x256xi32>
    %c-32_i32_19 = arith.constant -32 : i32
    %59 = vector.broadcast %c-32_i32_19 : i32 to vector<1x256xi32>
    %60 = arith.addi %2, %59 : vector<1x256xi32>
    %c256_i32 = arith.constant 256 : i32
    %61 = vector.broadcast %c256_i32 : i32 to vector<1x256xi32>
    %62 = arith.cmpi slt, %60, %61 : vector<1x256xi32>
    %63 = arith.andi %58, %62 : vector<1x256xi1>
    %c-16_i32 = arith.constant -16 : i32
    %64 = vector.broadcast %c-16_i32 : i32 to vector<1x256xi32>
    %65 = arith.addi %2, %64 : vector<1x256xi32>
    %c0_i32_20 = arith.constant 0 : i32
    %66 = vector.broadcast %c0_i32_20 : i32 to vector<1x256xi32>
    %67 = arith.cmpi sge, %65, %66 : vector<1x256xi32>
    %c-16_i32_21 = arith.constant -16 : i32
    %68 = vector.broadcast %c-16_i32_21 : i32 to vector<1x256xi32>
    %69 = arith.addi %2, %68 : vector<1x256xi32>
    %c256_i32_22 = arith.constant 256 : i32
    %70 = vector.broadcast %c256_i32_22 : i32 to vector<1x256xi32>
    %71 = arith.cmpi slt, %69, %70 : vector<1x256xi32>
    %72 = arith.andi %67, %71 : vector<1x256xi1>
    %c16_i32_23 = arith.constant 16 : i32
    %73 = vector.broadcast %c16_i32_23 : i32 to vector<1x256xi32>
    %74 = arith.addi %2, %73 : vector<1x256xi32>
    %c0_i32_24 = arith.constant 0 : i32
    %75 = vector.broadcast %c0_i32_24 : i32 to vector<1x256xi32>
    %76 = arith.cmpi sge, %74, %75 : vector<1x256xi32>
    %c16_i32_25 = arith.constant 16 : i32
    %77 = vector.broadcast %c16_i32_25 : i32 to vector<1x256xi32>
    %78 = arith.addi %2, %77 : vector<1x256xi32>
    %c256_i32_26 = arith.constant 256 : i32
    %79 = vector.broadcast %c256_i32_26 : i32 to vector<1x256xi32>
    %80 = arith.cmpi slt, %78, %79 : vector<1x256xi32>
    %81 = arith.andi %76, %80 : vector<1x256xi1>
    %c32_i32 = arith.constant 32 : i32
    %82 = vector.broadcast %c32_i32 : i32 to vector<1x256xi32>
    %83 = arith.addi %2, %82 : vector<1x256xi32>
    %c0_i32_27 = arith.constant 0 : i32
    %84 = vector.broadcast %c0_i32_27 : i32 to vector<1x256xi32>
    %85 = arith.cmpi sge, %83, %84 : vector<1x256xi32>
    %c32_i32_28 = arith.constant 32 : i32
    %86 = vector.broadcast %c32_i32_28 : i32 to vector<1x256xi32>
    %87 = arith.addi %2, %86 : vector<1x256xi32>
    %c256_i32_29 = arith.constant 256 : i32
    %88 = vector.broadcast %c256_i32_29 : i32 to vector<1x256xi32>
    %89 = arith.cmpi slt, %87, %88 : vector<1x256xi32>
    %90 = arith.andi %85, %89 : vector<1x256xi1>
    %c2_i32_30 = arith.constant 2 : i32
    %91 = tpu.dynamic_rotate %1 by %c2_i32_30 dim 1 : vector<4x256xf32>, i32 -> vector<4x256xf32>
    %cst = arith.constant 0xFF800000 : f32
    %92 = vector.shape_cast %27 : vector<1x256xi1> to vector<1x256xi1>
    %93 = vector.broadcast %92 : vector<1x256xi1> to vector<4x256xi1>
    %94 = vector.broadcast %cst : f32 to vector<4x256xf32>
    %95 = arith.select %93, %91, %94 : vector<4x256xi1>, vector<4x256xf32>
    %96 = arith.maximumf %1, %95 : vector<4x256xf32>
    %c1_i32_31 = arith.constant 1 : i32
    %97 = tpu.dynamic_rotate %1 by %c1_i32_31 dim 1 : vector<4x256xf32>, i32 -> vector<4x256xf32>
    %cst_32 = arith.constant 0xFF800000 : f32
    %98 = vector.shape_cast %36 : vector<1x256xi1> to vector<1x256xi1>
    %99 = vector.broadcast %98 : vector<1x256xi1> to vector<4x256xi1>
    %100 = vector.broadcast %cst_32 : f32 to vector<4x256xf32>
    %101 = arith.select %99, %97, %100 : vector<4x256xi1>, vector<4x256xf32>
    %102 = arith.maximumf %96, %101 : vector<4x256xf32>
    %c255_i32 = arith.constant 255 : i32
    %103 = tpu.dynamic_rotate %1 by %c255_i32 dim 1 : vector<4x256xf32>, i32 -> vector<4x256xf32>
    %cst_33 = arith.constant 0xFF800000 : f32
    %104 = vector.shape_cast %45 : vector<1x256xi1> to vector<1x256xi1>
    %105 = vector.broadcast %104 : vector<1x256xi1> to vector<4x256xi1>
    %106 = vector.broadcast %cst_33 : f32 to vector<4x256xf32>
    %107 = arith.select %105, %103, %106 : vector<4x256xi1>, vector<4x256xf32>
    %108 = arith.maximumf %102, %107 : vector<4x256xf32>
    %c254_i32 = arith.constant 254 : i32
    %109 = tpu.dynamic_rotate %1 by %c254_i32 dim 1 : vector<4x256xf32>, i32 -> vector<4x256xf32>
    %cst_34 = arith.constant 0xFF800000 : f32
    %110 = vector.shape_cast %54 : vector<1x256xi1> to vector<1x256xi1>
    %111 = vector.broadcast %110 : vector<1x256xi1> to vector<4x256xi1>
    %112 = vector.broadcast %cst_34 : f32 to vector<4x256xf32>
    %113 = arith.select %111, %109, %112 : vector<4x256xi1>, vector<4x256xf32>
    %114 = arith.maximumf %108, %113 : vector<4x256xf32>
    %c32_i32_35 = arith.constant 32 : i32
    %115 = tpu.dynamic_rotate %114 by %c32_i32_35 dim 1 : vector<4x256xf32>, i32 -> vector<4x256xf32>
    %cst_36 = arith.constant 0xFF800000 : f32
    %116 = vector.shape_cast %63 : vector<1x256xi1> to vector<1x256xi1>
    %117 = vector.broadcast %116 : vector<1x256xi1> to vector<4x256xi1>
    %118 = vector.broadcast %cst_36 : f32 to vector<4x256xf32>
    %119 = arith.select %117, %115, %118 : vector<4x256xi1>, vector<4x256xf32>
    %120 = arith.maximumf %114, %119 : vector<4x256xf32>
    %c16_i32_37 = arith.constant 16 : i32
    %121 = tpu.dynamic_rotate %114 by %c16_i32_37 dim 1 : vector<4x256xf32>, i32 -> vector<4x256xf32>
    %cst_38 = arith.constant 0xFF800000 : f32
    %122 = vector.shape_cast %72 : vector<1x256xi1> to vector<1x256xi1>
    %123 = vector.broadcast %122 : vector<1x256xi1> to vector<4x256xi1>
    %124 = vector.broadcast %cst_38 : f32 to vector<4x256xf32>
    %125 = arith.select %123, %121, %124 : vector<4x256xi1>, vector<4x256xf32>
    %126 = arith.maximumf %120, %125 : vector<4x256xf32>
    %c240_i32 = arith.constant 240 : i32
    %127 = tpu.dynamic_rotate %114 by %c240_i32 dim 1 : vector<4x256xf32>, i32 -> vector<4x256xf32>
    %cst_39 = arith.constant 0xFF800000 : f32
    %128 = vector.shape_cast %81 : vector<1x256xi1> to vector<1x256xi1>
    %129 = vector.broadcast %128 : vector<1x256xi1> to vector<4x256xi1>
    %130 = vector.broadcast %cst_39 : f32 to vector<4x256xf32>
    %131 = arith.select %129, %127, %130 : vector<4x256xi1>, vector<4x256xf32>
    %132 = arith.maximumf %126, %131 : vector<4x256xf32>
    %c224_i32 = arith.constant 224 : i32
    %133 = tpu.dynamic_rotate %114 by %c224_i32 dim 1 : vector<4x256xf32>, i32 -> vector<4x256xf32>
    %cst_40 = arith.constant 0xFF800000 : f32
    %134 = vector.shape_cast %90 : vector<1x256xi1> to vector<1x256xi1>
    %135 = vector.broadcast %134 : vector<1x256xi1> to vector<4x256xi1>
    %136 = vector.broadcast %cst_40 : f32 to vector<4x256xf32>
    %137 = arith.select %135, %133, %136 : vector<4x256xi1>, vector<4x256xf32>
    %138 = arith.maximumf %132, %137 : vector<4x256xf32>
    %c2_i32_41 = arith.constant 2 : i32
    %139 = tpu.dynamic_rotate %138 by %c2_i32_41 dim 1 : vector<4x256xf32>, i32 -> vector<4x256xf32>
    %cst_42 = arith.constant 0xFF800000 : f32
    %140 = vector.shape_cast %27 : vector<1x256xi1> to vector<1x256xi1>
    %141 = vector.broadcast %140 : vector<1x256xi1> to vector<4x256xi1>
    %142 = vector.broadcast %cst_42 : f32 to vector<4x256xf32>
    %143 = arith.select %141, %139, %142 : vector<4x256xi1>, vector<4x256xf32>
    %144 = arith.maximumf %138, %143 : vector<4x256xf32>
    %c1_i32_43 = arith.constant 1 : i32
    %145 = tpu.dynamic_rotate %138 by %c1_i32_43 dim 1 : vector<4x256xf32>, i32 -> vector<4x256xf32>
    %cst_44 = arith.constant 0xFF800000 : f32
    %146 = vector.shape_cast %36 : vector<1x256xi1> to vector<1x256xi1>
    %147 = vector.broadcast %146 : vector<1x256xi1> to vector<4x256xi1>
    %148 = vector.broadcast %cst_44 : f32 to vector<4x256xf32>
    %149 = arith.select %147, %145, %148 : vector<4x256xi1>, vector<4x256xf32>
    %150 = arith.maximumf %144, %149 : vector<4x256xf32>
    %c255_i32_45 = arith.constant 255 : i32
    %151 = tpu.dynamic_rotate %138 by %c255_i32_45 dim 1 : vector<4x256xf32>, i32 -> vector<4x256xf32>
    %cst_46 = arith.constant 0xFF800000 : f32
    %152 = vector.shape_cast %45 : vector<1x256xi1> to vector<1x256xi1>
    %153 = vector.broadcast %152 : vector<1x256xi1> to vector<4x256xi1>
    %154 = vector.broadcast %cst_46 : f32 to vector<4x256xf32>
    %155 = arith.select %153, %151, %154 : vector<4x256xi1>, vector<4x256xf32>
    %156 = arith.maximumf %150, %155 : vector<4x256xf32>
    %c254_i32_47 = arith.constant 254 : i32
    %157 = tpu.dynamic_rotate %138 by %c254_i32_47 dim 1 : vector<4x256xf32>, i32 -> vector<4x256xf32>
    %cst_48 = arith.constant 0xFF800000 : f32
    %158 = vector.shape_cast %54 : vector<1x256xi1> to vector<1x256xi1>
    %159 = vector.broadcast %158 : vector<1x256xi1> to vector<4x256xi1>
    %160 = vector.broadcast %cst_48 : f32 to vector<4x256xf32>
    %161 = arith.select %159, %157, %160 : vector<4x256xi1>, vector<4x256xf32>
    %162 = arith.maximumf %156, %161 : vector<4x256xf32>
    %c32_i32_49 = arith.constant 32 : i32
    %163 = tpu.dynamic_rotate %162 by %c32_i32_49 dim 1 : vector<4x256xf32>, i32 -> vector<4x256xf32>
    %cst_50 = arith.constant 0xFF800000 : f32
    %164 = vector.shape_cast %63 : vector<1x256xi1> to vector<1x256xi1>
    %165 = vector.broadcast %164 : vector<1x256xi1> to vector<4x256xi1>
    %166 = vector.broadcast %cst_50 : f32 to vector<4x256xf32>
    %167 = arith.select %165, %163, %166 : vector<4x256xi1>, vector<4x256xf32>
    %168 = arith.maximumf %162, %167 : vector<4x256xf32>
    %c16_i32_51 = arith.constant 16 : i32
    %169 = tpu.dynamic_rotate %162 by %c16_i32_51 dim 1 : vector<4x256xf32>, i32 -> vector<4x256xf32>
    %cst_52 = arith.constant 0xFF800000 : f32
    %170 = vector.shape_cast %72 : vector<1x256xi1> to vector<1x256xi1>
    %171 = vector.broadcast %170 : vector<1x256xi1> to vector<4x256xi1>
    %172 = vector.broadcast %cst_52 : f32 to vector<4x256xf32>
    %173 = arith.select %171, %169, %172 : vector<4x256xi1>, vector<4x256xf32>
    %174 = arith.maximumf %168, %173 : vector<4x256xf32>
    %c240_i32_53 = arith.constant 240 : i32
    %175 = tpu.dynamic_rotate %162 by %c240_i32_53 dim 1 : vector<4x256xf32>, i32 -> vector<4x256xf32>
    %cst_54 = arith.constant 0xFF800000 : f32
    %176 = vector.shape_cast %81 : vector<1x256xi1> to vector<1x256xi1>
    %177 = vector.broadcast %176 : vector<1x256xi1> to vector<4x256xi1>
    %178 = vector.broadcast %cst_54 : f32 to vector<4x256xf32>
    %179 = arith.select %177, %175, %178 : vector<4x256xi1>, vector<4x256xf32>
    %180 = arith.maximumf %174, %179 : vector<4x256xf32>
    %c224_i32_55 = arith.constant 224 : i32
    %181 = tpu.dynamic_rotate %162 by %c224_i32_55 dim 1 : vector<4x256xf32>, i32 -> vector<4x256xf32>
    %cst_56 = arith.constant 0xFF800000 : f32
    %182 = vector.shape_cast %90 : vector<1x256xi1> to vector<1x256xi1>
    %183 = vector.broadcast %182 : vector<1x256xi1> to vector<4x256xi1>
    %184 = vector.broadcast %cst_56 : f32 to vector<4x256xf32>
    %185 = arith.select %183, %181, %184 : vector<4x256xi1>, vector<4x256xf32>
    %186 = arith.maximumf %180, %185 : vector<4x256xf32>
    %c2_i32_57 = arith.constant 2 : i32
    %187 = tpu.dynamic_rotate %186 by %c2_i32_57 dim 1 : vector<4x256xf32>, i32 -> vector<4x256xf32>
    %cst_58 = arith.constant 0xFF800000 : f32
    %188 = vector.shape_cast %27 : vector<1x256xi1> to vector<1x256xi1>
    %189 = vector.broadcast %188 : vector<1x256xi1> to vector<4x256xi1>
    %190 = vector.broadcast %cst_58 : f32 to vector<4x256xf32>
    %191 = arith.select %189, %187, %190 : vector<4x256xi1>, vector<4x256xf32>
    %192 = arith.maximumf %186, %191 : vector<4x256xf32>
    %c1_i32_59 = arith.constant 1 : i32
    %193 = tpu.dynamic_rotate %186 by %c1_i32_59 dim 1 : vector<4x256xf32>, i32 -> vector<4x256xf32>
    %cst_60 = arith.constant 0xFF800000 : f32
    %194 = vector.shape_cast %36 : vector<1x256xi1> to vector<1x256xi1>
    %195 = vector.broadcast %194 : vector<1x256xi1> to vector<4x256xi1>
    %196 = vector.broadcast %cst_60 : f32 to vector<4x256xf32>
    %197 = arith.select %195, %193, %196 : vector<4x256xi1>, vector<4x256xf32>
    %198 = arith.maximumf %192, %197 : vector<4x256xf32>
    %c255_i32_61 = arith.constant 255 : i32
    %199 = tpu.dynamic_rotate %186 by %c255_i32_61 dim 1 : vector<4x256xf32>, i32 -> vector<4x256xf32>
    %cst_62 = arith.constant 0xFF800000 : f32
    %200 = vector.shape_cast %45 : vector<1x256xi1> to vector<1x256xi1>
    %201 = vector.broadcast %200 : vector<1x256xi1> to vector<4x256xi1>
    %202 = vector.broadcast %cst_62 : f32 to vector<4x256xf32>
    %203 = arith.select %201, %199, %202 : vector<4x256xi1>, vector<4x256xf32>
    %204 = arith.maximumf %198, %203 : vector<4x256xf32>
    %c254_i32_63 = arith.constant 254 : i32
    %205 = tpu.dynamic_rotate %186 by %c254_i32_63 dim 1 : vector<4x256xf32>, i32 -> vector<4x256xf32>
    %cst_64 = arith.constant 0xFF800000 : f32
    %206 = vector.shape_cast %54 : vector<1x256xi1> to vector<1x256xi1>
    %207 = vector.broadcast %206 : vector<1x256xi1> to vector<4x256xi1>
    %208 = vector.broadcast %cst_64 : f32 to vector<4x256xf32>
    %209 = arith.select %207, %205, %208 : vector<4x256xi1>, vector<4x256xf32>
    %210 = arith.maximumf %204, %209 : vector<4x256xf32>
    %c32_i32_65 = arith.constant 32 : i32
    %211 = tpu.dynamic_rotate %210 by %c32_i32_65 dim 1 : vector<4x256xf32>, i32 -> vector<4x256xf32>
    %cst_66 = arith.constant 0xFF800000 : f32
    %212 = vector.shape_cast %63 : vector<1x256xi1> to vector<1x256xi1>
    %213 = vector.broadcast %212 : vector<1x256xi1> to vector<4x256xi1>
    %214 = vector.broadcast %cst_66 : f32 to vector<4x256xf32>
    %215 = arith.select %213, %211, %214 : vector<4x256xi1>, vector<4x256xf32>
    %216 = arith.maximumf %210, %215 : vector<4x256xf32>
    %c16_i32_67 = arith.constant 16 : i32
    %217 = tpu.dynamic_rotate %210 by %c16_i32_67 dim 1 : vector<4x256xf32>, i32 -> vector<4x256xf32>
    %cst_68 = arith.constant 0xFF800000 : f32
    %218 = vector.shape_cast %72 : vector<1x256xi1> to vector<1x256xi1>
    %219 = vector.broadcast %218 : vector<1x256xi1> to vector<4x256xi1>
    %220 = vector.broadcast %cst_68 : f32 to vector<4x256xf32>
    %221 = arith.select %219, %217, %220 : vector<4x256xi1>, vector<4x256xf32>
    %222 = arith.maximumf %216, %221 : vector<4x256xf32>
    %c240_i32_69 = arith.constant 240 : i32
    %223 = tpu.dynamic_rotate %210 by %c240_i32_69 dim 1 : vector<4x256xf32>, i32 -> vector<4x256xf32>
    %cst_70 = arith.constant 0xFF800000 : f32
    %224 = vector.shape_cast %81 : vector<1x256xi1> to vector<1x256xi1>
    %225 = vector.broadcast %224 : vector<1x256xi1> to vector<4x256xi1>
    %226 = vector.broadcast %cst_70 : f32 to vector<4x256xf32>
    %227 = arith.select %225, %223, %226 : vector<4x256xi1>, vector<4x256xf32>
    %228 = arith.maximumf %222, %227 : vector<4x256xf32>
    %c224_i32_71 = arith.constant 224 : i32
    %229 = tpu.dynamic_rotate %210 by %c224_i32_71 dim 1 : vector<4x256xf32>, i32 -> vector<4x256xf32>
    %cst_72 = arith.constant 0xFF800000 : f32
    %230 = vector.shape_cast %90 : vector<1x256xi1> to vector<1x256xi1>
    %231 = vector.broadcast %230 : vector<1x256xi1> to vector<4x256xi1>
    %232 = vector.broadcast %cst_72 : f32 to vector<4x256xf32>
    %233 = arith.select %231, %229, %232 : vector<4x256xi1>, vector<4x256xf32>
    %234 = arith.maximumf %228, %233 : vector<4x256xf32>
    %c0_73 = arith.constant 0 : index
    %c0_74 = arith.constant 0 : index
    %c0_75 = arith.constant 0 : index
    %c0_76 = arith.constant 0 : index
    %235 = vector.load %arg3[%c0_73, %c0_74, %c0_75, %c0_76] : memref<1x4x4x256xf32, #tpu.memory_space<vmem>>, vector<1x1x4x256xf32>
    %236 = vector.shape_cast %235 : vector<1x1x4x256xf32> to vector<4x256xf32>
    %237 = vector.shape_cast %1 : vector<4x256xf32> to vector<1x1x4x256xf32>
    tpu.vector_store %arg3[%c0_73, %c0_74, %c0_75, %c0_76], %237 {strides = array<i32>} : memref<1x4x4x256xf32, #tpu.memory_space<vmem>>, vector<1x1x4x256xf32>,
    %c0_77 = arith.constant 0 : index
    %c1 = arith.constant 1 : index
    %c0_78 = arith.constant 0 : index
    %c0_79 = arith.constant 0 : index
    %238 = vector.load %arg3[%c0_77, %c1, %c0_78, %c0_79] : memref<1x4x4x256xf32, #tpu.memory_space<vmem>>, vector<1x1x4x256xf32>
    %239 = vector.shape_cast %238 : vector<1x1x4x256xf32> to vector<4x256xf32>
    %240 = vector.shape_cast %138 : vector<4x256xf32> to vector<1x1x4x256xf32>
    tpu.vector_store %arg3[%c0_77, %c1, %c0_78, %c0_79], %240 {strides = array<i32>} : memref<1x4x4x256xf32, #tpu.memory_space<vmem>>, vector<1x1x4x256xf32>,
    %c0_80 = arith.constant 0 : index
    %c2 = arith.constant 2 : index
    %c0_81 = arith.constant 0 : index
    %c0_82 = arith.constant 0 : index
    %241 = vector.load %arg3[%c0_80, %c2, %c0_81, %c0_82] : memref<1x4x4x256xf32, #tpu.memory_space<vmem>>, vector<1x1x4x256xf32>
    %242 = vector.shape_cast %241 : vector<1x1x4x256xf32> to vector<4x256xf32>
    %243 = vector.shape_cast %186 : vector<4x256xf32> to vector<1x1x4x256xf32>
    tpu.vector_store %arg3[%c0_80, %c2, %c0_81, %c0_82], %243 {strides = array<i32>} : memref<1x4x4x256xf32, #tpu.memory_space<vmem>>, vector<1x1x4x256xf32>,
    %c0_83 = arith.constant 0 : index
    %c3 = arith.constant 3 : index
    %c0_84 = arith.constant 0 : index
    %c0_85 = arith.constant 0 : index
    %244 = vector.load %arg3[%c0_83, %c3, %c0_84, %c0_85] : memref<1x4x4x256xf32, #tpu.memory_space<vmem>>, vector<1x1x4x256xf32>
    %245 = vector.shape_cast %244 : vector<1x1x4x256xf32> to vector<4x256xf32>
    %246 = vector.shape_cast %234 : vector<4x256xf32> to vector<1x1x4x256xf32>
    tpu.vector_store %arg3[%c0_83, %c3, %c0_84, %c0_85], %246 {strides = array<i32>} : memref<1x4x4x256xf32, #tpu.memory_space<vmem>>, vector<1x1x4x256xf32>,
    return
  }
  func.func @transform_0(%arg0: i32, %arg1: i32) -> (i32, i32, i32) {
    %c0_i32 = arith.constant 0 : i32
    %c0_i32_0 = arith.constant 0 : i32
    return %arg0, %arg1, %c0_i32 : i32, i32, i32
  }
  func.func @transform_1(%arg0: i32, %arg1: i32) -> (i32, i32, i32, i32) {
    %c0_i32 = arith.constant 0 : i32
    %c0_i32_0 = arith.constant 0 : i32
    %c0_i32_1 = arith.constant 0 : i32
    return %arg0, %c0_i32, %arg1, %c0_i32_0 : i32, i32, i32, i32
  }
}

</mosaic_0001>

<llo_original>
// kernel: tpu_custom_call.1
$region0: #{tpu_custom_call.1}
  #allocation0 [shape = 'u32[]', space=smem, size = 0x4, offset = 0x4, fixed_abs, tag = 'smem constant byte address 0x4 - core index']
  #allocation1 [shape = 'u32[144,128]{1,0:T(1,128)}', space=vmem, size = 0x12000, scoped, tag = 'internal scratch']
  %s0 = inlined_call_operand.hbm [shape: f32[2,4,256], index: 0, kind: input, shape index: {}]
  %s1 = inlined_call_operand.hbm [shape: f32[2,4,4,256], index: 1, kind: output, shape index: {}]
  %s2 = sld [smem:[#allocation0]]
  $region41: #{tpu_custom_call.1} parent=0
    _
  %s4 = ssub.s32 1, %s2
  %s5 = scalar_select 0, %s4, %s2
  $region1: #{tpu_custom_call.1} parent=0
    #allocation2 [shape = 'u8[8192]{0}', space=vmem, size = 0x2000, scoped, tag = 'input window, operand 0']
    #allocation3 [shape = 's32[2]{0}', space=sflag, size = 0x8, scoped, tag = 'scoped memory for tpu_custom_call.1']
    #allocation4 [shape = 's32[2]{0}', space=sflag, size = 0x8, scoped, tag = 'scoped memory for tpu_custom_call.1']
    #allocation5 [shape = 'u8[32768]{0}', space=vmem, size = 0x8000, scoped, tag = 'output window, operand 0']
    %6 = vsyncpa [#allocation3], 0
    %s7 = scalar_lea.sflag [#allocation3], 1
    %8 = vsyncpa %s7, 0
    %9 = vsyncpa [#allocation4], 0
    %s10 = scalar_lea.sflag [#allocation4], 1
    %11 = vsyncpa %s10, 0
    loop: start=0, step=1, limit=4
    $region2: #{tpu_custom_call.1} parent=1 // loop_pre_header
      _
    $region3: #{tpu_custom_call.1} parent=1 // loop_header
      %s13 = sphi 0, %s17
      %p14 = scmp.ge.s32.totalorder %s13, 4
      %s20 = sphi 0, %s32
      %s21 = sphi 0, %s28
      %s22 = sphi 0, %s20
      %s23 = sphi 0, %s21
      %s24 = sphi 0, %s22
      %s25 = sphi 0, %s23
      %s37 = sphi 0, %s39
      %s40 = sphi 0, %s37
      %s41 = sphi 0, %s40
      %s57 = sphi 0, %s41
      %s65 = sphi 0, %s67
      %s68 = sphi 0, %s65
      %s69 = sphi 0, %s68
      %s85 = sphi 0, %s69
    $region4: #{tpu_custom_call.1} parent=1 // loop_header_branch
      %16 = sbr.rel (%p14) target = $region8
    $region5: #{tpu_custom_call.1} parent=1 // loop_body
      %s18 = ssub.s32 %s13, 1
      %s19 = ssub.s32 %s13, 2
      %s26 = sadd.s32 1, %s21
      %p27 = scmp.ge.s32.totalorder %s26, 1
      %s28 = scalar_select %p27, 0, %s26
      %s29 = sadd.s32 1, %s20
      %s30 = scalar_select %p27, %s29, %s20
      %p31 = scmp.ge.s32.totalorder %s30, 2
      %s32 = scalar_select %p31, 0, %s30
      %s33 = ssub.s32 %s20, %s32
      %s34 = ssub.s32 %s21, %s28
      %s35 = sor.u32 %s33, %s34
      %p36 = scmp.eq.s32.totalorder %s35, 0
      %s38 = sadd.s32 %s37, 1
      %s39 = scalar_select %p36, %s37, %s38
      %p42 = pneg %p36
      %p43 = scmp.eq.s32.totalorder %s13, 1
      %p44 = por %p42, %p43
      %p45 = scmp.ne.s32.totalorder %s37, %s40
      %p46 = scmp.eq.s32.totalorder %s13, 0
      %p47 = por %p45, %p46
      %p48 = scmp.ne.s32.totalorder %s37, %s40
      %p49 = scmp.eq.s32.totalorder %s18, 1
      %p50 = por %p48, %p49
      %p51 = scmp.ne.s32.totalorder %s40, %s41
      %p52 = scmp.eq.s32.totalorder %s18, 0
      %p53 = por %p51, %p52
      %p54 = scmp.ne.s32.totalorder %s40, %s41
      %p55 = scmp.eq.s32.totalorder %s19, 1
      %p56 = por %p54, %p55
      %p58 = scmp.ne.s32.totalorder %s41, %s57
      %p59 = scmp.eq.s32.totalorder %s19, 0
      %p60 = por %p58, %p59
      %s61 = ssub.s32 %s20, %s32
      %s62 = ssub.s32 %s21, %s28
      %s63 = sor.u32 %s61, %s62
      %p64 = scmp.eq.s32.totalorder %s63, 0
      %s66 = sadd.s32 %s65, 1
      %s67 = scalar_select %p64, %s65, %s66
      %p70 = pneg %p64
      %p71 = scmp.eq.s32.totalorder %s13, 1
      %p72 = por %p70, %p71
      %p73 = scmp.ne.s32.totalorder %s65, %s68
      %p74 = scmp.eq.s32.totalorder %s13, 0
      %p75 = por %p73, %p74
      %p76 = scmp.ne.s32.totalorder %s65, %s68
      %p77 = scmp.eq.s32.totalorder %s18, 1
      %p78 = por %p76, %p77
      %p79 = scmp.ne.s32.totalorder %s68, %s69
      %p80 = scmp.eq.s32.totalorder %s18, 0
      %p81 = por %p79, %p80
      %p82 = scmp.ne.s32.totalorder %s68, %s69
      %p83 = scmp.eq.s32.totalorder %s19, 1
      %p84 = por %p82, %p83
      %p86 = scmp.ne.s32.totalorder %s69, %s85
      %p87 = scmp.eq.s32.totalorder %s19, 0
      %p88 = por %p86, %p87
      %p89 = scmp.le.s32.totalorder 1, %s13
      %p90 = scmp.lt.s32.totalorder %s13, 3
      %p91 = pnand %p89, %p90
      %p92 = pneg %p91
      // Predicated region
      $region9: #{tpu_custom_call.1} parent=5 // pred_check
        _
      $region10: #{tpu_custom_call.1} parent=5 // pred_check_branch
        %94 = sbr.rel (%p91) target = $region12
      $region11: #{tpu_custom_call.1} parent=5 // pred_region
        %s95 = ssub.s32 %s13, 1
      $region12: #{tpu_custom_call.1} parent=5 // pred_fallthru
        _
      %p96 = scmp.lt.s32.totalorder %s13, 2
      // Predicated region
      $region13: #{tpu_custom_call.1} parent=5 // pred_check
        %p97 = pneg %p96
      $region14: #{tpu_custom_call.1} parent=5 // pred_check_branch
        %99 = sbr.rel (%p97) target = $region16
      $region15: #{tpu_custom_call.1} parent=5 // pred_region
        // Predicated region
        $region17: #{tpu_custom_call.1} parent=15 // pred_check
          %p100 = pneg %p47
        $region18: #{tpu_custom_call.1} parent=15 // pred_check_branch
          %102 = sbr.rel (%p100) target = $region20
        $region19: #{tpu_custom_call.1} parent=15 // pred_region
          %s103 = sand.u32 %s37, 1
          %s104 = scalar_lea.sflag [#allocation3], %s103
          %s105 = sand.u32 %s37, 1
          %s106 = smul.addr %s105, 8
          %s107 = scalar_lea.vmem [#allocation2], %s106
          %s109 = ssub.s32 128, 128
          %110 = vsyncadd %s104, %s109
          %s111 = smul.addr %s21, 2
          %s112 = smul.addr %s20, 2
          %s113 = sadd.s32 %s111, %s112
          %s114 = smul.addr %s113, 64
          %s115 = scalar_lea.hbm %s0, %s114
          %s117 = sshll.u32 %s107, 4
          %s118 = int_to_ptr.vmem [resolvable:$true] %s117
          %120 = dma.hbm_to_vmem [thread:$0]  %s115, 128, %s118, %s104
        $region20: #{tpu_custom_call.1} parent=15 // pred_fallthru
          _
      $region16: #{tpu_custom_call.1} parent=5 // pred_fallthru
        _
      %p121 = scmp.le.s32.totalorder 1, %s13
      %p122 = scmp.lt.s32.totalorder %s13, 3
      %p123 = pnand %p121, %p122
      %p124 = pneg %p123
      // Predicated region
      $region21: #{tpu_custom_call.1} parent=5 // pred_check
        _
      $region22: #{tpu_custom_call.1} parent=5 // pred_check_branch
        %126 = sbr.rel (%p123) target = $region24
      $region23: #{tpu_custom_call.1} parent=5 // pred_region
        %s127 = ssub.s32 %s13, 1
        %s128 = sand.u32 %s40, 1
        %s129 = scalar_lea.sflag [#allocation3], %s128
        %s130 = sand.u32 %s40, 1
        %s131 = smul.addr %s130, 8
        %s132 = scalar_lea.vmem [#allocation2], %s131
        // Predicated region
        $region25: #{tpu_custom_call.1} parent=23 // pred_check
          %p133 = pneg %p53
        $region26: #{tpu_custom_call.1} parent=23 // pred_check_branch
          %135 = sbr.rel (%p133) target = $region28
        $region27: #{tpu_custom_call.1} parent=23 // pred_region
          %136 = dma.done %s129, 128
        $region28: #{tpu_custom_call.1} parent=23 // pred_fallthru
          _
        %s137 = sand.u32 %s40, 1
        %s138 = scalar_lea.sflag [#allocation3], %s137
        %s139 = sand.u32 %s40, 1
        %s140 = smul.addr %s139, 8
        %s141 = scalar_lea.vmem [#allocation2], %s140
        %p142 = pneg %p53
        %p143 = pneg %p50
        %p144 = pneg %p81
        %p145 = pneg %p78
        %s146 = sand.u32 %s68, 1
        %s147 = scalar_lea.sflag [#allocation4], %s146
        %s148 = sand.u32 %s68, 1
        %s149 = smul.addr %s148, 32
        %s150 = scalar_lea.vmem [#allocation5], %s149
        %v151 = vld [vmem:[%s132] sm:$0xff]
        %v152 = vlaneseq
        %v153 = vand.u32 %v152, 127
        %v154 = vadd.s32 %v153, 128
        %vm155 = vcmp.lt.s32.totalorder %v153, 0
        %v156 = vsub.s32 0, %v153
        %v157 = vsel %vm155, %v156, %v153
        %v158 = vshrl.u32 %v157, 4
        %v159 = vand.u32 %v157, 15
        %v160 = vsub.s32 0, %v159
        %v161 = vsel %vm155, %v160, %v159
        %vm162 = vcmp.lt.s32.totalorder %v154, 0
        %v163 = vsub.s32 0, %v154
        %v164 = vsel %vm162, %v163, %v154
        %v165 = vshrl.u32 %v164, 4
        %v166 = vand.u32 %v164, 15
        %v167 = vsub.s32 0, %v166
        %v168 = vsel %vm162, %v167, %v166
        %vm169 = vcmp.ne.s32.totalorder %v161, 0
        %vm170 = vcmp.ne.s32.totalorder %v168, 0
        %vm171 = vcmp.lt.s32.totalorder %v161, 0
        %vm172 = vcmp.lt.s32.totalorder %v168, 0
        %vm173 = vmand %vm171, %vm169
        %vm174 = vmand %vm172, %vm170
        %v175 = vadd.s32 %v161, 16
        %v176 = vadd.s32 %v168, 16
        %v177 = vsel %vm173, %v175, %v161
        %v178 = vsel %vm174, %v176, %v168
        %v179 = vadd.s32 %v177, 4294967294
        %v180 = vadd.s32 %v178, 4294967294
        %vm181 = vcmp.ge.s32.totalorder %v179, 0
        %vm182 = vcmp.ge.s32.totalorder %v180, 0
        %vm183 = vcmp.lt.s32.totalorder %v179, 16
        %vm184 = vcmp.lt.s32.totalorder %v180, 16
        %vm185 = vmand %vm181, %vm183
        %vm186 = vmand %vm182, %vm184
        %v187 = vadd.s32 %v177, 4294967295
        %v188 = vadd.s32 %v178, 4294967295
        %vm189 = vcmp.ge.s32.totalorder %v187, 0
        %vm190 = vcmp.ge.s32.totalorder %v188, 0
        %vm191 = vcmp.lt.s32.totalorder %v187, 16
        %vm192 = vcmp.lt.s32.totalorder %v188, 16
        %vm193 = vmand %vm189, %vm191
        %vm194 = vmand %vm190, %vm192
        %v195 = vadd.s32 %v177, 1
        %v196 = vadd.s32 %v178, 1
        %vm197 = vcmp.ge.s32.totalorder %v195, 0
        %vm198 = vcmp.ge.s32.totalorder %v196, 0
        %vm199 = vcmp.lt.s32.totalorder %v195, 16
        %vm200 = vcmp.lt.s32.totalorder %v196, 16
        %vm201 = vmand %vm197, %vm199
        %vm202 = vmand %vm198, %vm200
        %v203 = vadd.s32 %v177, 2
        %v204 = vadd.s32 %v178, 2
        %vm205 = vcmp.ge.s32.totalorder %v203, 0
        %vm206 = vcmp.ge.s32.totalorder %v204, 0
        %vm207 = vcmp.lt.s32.totalorder %v203, 16
        %vm208 = vcmp.lt.s32.totalorder %v204, 16
        %vm209 = vmand %vm205, %vm207
        %vm210 = vmand %vm206, %vm208
        %v211 = vadd.s32 %v153, 4294967264
        %v212 = vadd.s32 %v154, 4294967264
        %vm213 = vcmp.ge.s32.totalorder %v211, 0
        %vm214 = vcmp.ge.s32.totalorder %v212, 0
        %vm215 = vcmp.lt.s32.totalorder %v211, 256
        %vm216 = vcmp.lt.s32.totalorder %v212, 256
        %vm217 = vmand %vm213, %vm215
        %vm218 = vmand %vm214, %vm216
        %v219 = vadd.s32 %v153, 4294967280
        %v220 = vadd.s32 %v154, 4294967280
        %vm221 = vcmp.ge.s32.totalorder %v219, 0
        %vm222 = vcmp.ge.s32.totalorder %v220, 0
        %vm223 = vcmp.lt.s32.totalorder %v219, 256
        %vm224 = vcmp.lt.s32.totalorder %v220, 256
        %vm225 = vmand %vm221, %vm223
        %vm226 = vmand %vm222, %vm224
        %v227 = vadd.s32 %v153, 16
        %v228 = vadd.s32 %v154, 16
        %vm229 = vcmp.ge.s32.totalorder %v227, 0
        %vm230 = vcmp.ge.s32.totalorder %v228, 0
        %vm231 = vcmp.lt.s32.totalorder %v227, 256
        %vm232 = vcmp.lt.s32.totalorder %v228, 256
        %vm233 = vmand %vm229, %vm231
        %vm234 = vmand %vm230, %vm232
        %v235 = vadd.s32 %v153, 32
        %v236 = vadd.s32 %v154, 32
        %vm237 = vcmp.ge.s32.totalorder %v235, 0
        %vm238 = vcmp.ge.s32.totalorder %v236, 0
        %vm239 = vcmp.lt.s32.totalorder %v235, 256
        %vm240 = vcmp.lt.s32.totalorder %v236, 256
        %vm241 = vmand %vm237, %vm239
        %vm242 = vmand %vm238, %vm240
        %v244 = vcombine.high %v151, %v151
        %246 = vrot.lane.b32.xlu0 %v151, 2
        %v247 = vpop.permute.xlu0 %246
        %248 = vrot.lane.b32.xlu0 %v244, 2
        %v249 = vpop.permute.xlu0 %248
        %vm250 = vcmp.lt.s32.totalorder %v153, 2
        %v251 = vsel %vm250, %v247, %v249
        %v252 = vsel %vm250, %v249, %v247
        %v253 = vsel %vm185, 1, 0
        %v254 = vsel %vm186, 1, 0
        %vm255 = vcmp.eq.s32.totalorder %v253, 1
        %vm256 = vcmp.eq.s32.totalorder %v254, 1
        %v257 = vsel %vm255, %v252, -inf
        %v258 = vsel %vm256, %v251, -inf
        %v261 = vcombine.low %v257, %v258
        %v263 = vmax.f32 %v151, %v261
        %264 = vrot.lane.b32.xlu0 %v151, 1
        %v265 = vpop.permute.xlu0 %264
        %266 = vrot.lane.b32.xlu0 %v244, 1
        %v267 = vpop.permute.xlu0 %266
        %vm268 = vcmp.lt.s32.totalorder %v153, 1
        %v269 = vsel %vm268, %v265, %v267
        %v270 = vsel %vm268, %v267, %v265
        %v271 = vsel %vm193, 1, 0
        %v272 = vsel %vm194, 1, 0
        %vm273 = vcmp.eq.s32.totalorder %v271, 1
        %vm274 = vcmp.eq.s32.totalorder %v272, 1
        %v275 = vsel %vm273, %v270, -inf
        %v276 = vsel %vm274, %v269, -inf
        %v279 = vcombine.low %v275, %v276
        %v281 = vmax.f32 %v263, %v279
        %282 = vrot.lane.b32.xlu0 %v151, 127
        %v283 = vpop.permute.xlu0 %282
        %284 = vrot.lane.b32.xlu0 %v244, 127
        %v285 = vpop.permute.xlu0 %284
        %vm286 = vcmp.lt.s32.totalorder %v153, 127
        %v287 = vsel %vm286, %v283, %v285
        %v288 = vsel %vm286, %v285, %v283
        %v289 = vsel %vm201, 1, 0
        %v290 = vsel %vm202, 1, 0
        %vm291 = vcmp.eq.s32.totalorder %v289, 1
        %vm292 = vcmp.eq.s32.totalorder %v290, 1
        %v293 = vsel %vm291, %v287, -inf
        %v294 = vsel %vm292, %v288, -inf
        %v297 = vcombine.low %v293, %v294
        %v299 = vmax.f32 %v281, %v297
        %300 = vrot.lane.b32.xlu0 %v151, 126
        %v301 = vpop.permute.xlu0 %300
        %302 = vrot.lane.b32.xlu0 %v244, 126
        %v303 = vpop.permute.xlu0 %302
        %vm304 = vcmp.lt.s32.totalorder %v153, 126
        %v305 = vsel %vm304, %v301, %v303
        %v306 = vsel %vm304, %v303, %v301
        %v307 = vsel %vm209, 1, 0
        %v308 = vsel %vm210, 1, 0
        %vm309 = vcmp.eq.s32.totalorder %v307, 1
        %vm310 = vcmp.eq.s32.totalorder %v308, 1
        %v311 = vsel %vm309, %v305, -inf
        %v312 = vsel %vm310, %v306, -inf
        %v315 = vcombine.low %v311, %v312
        %v317 = vmax.f32 %v299, %v315
        %v319 = vcombine.high %v317, %v317
        %321 = vrot.lane.b32.xlu0 %v317, 32
        %v322 = vpop.permute.xlu0 %321
        %323 = vrot.lane.b32.xlu0 %v319, 32
        %v324 = vpop.permute.xlu0 %323
        %vm325 = vcmp.lt.s32.totalorder %v153, 32
        %v326 = vsel %vm325, %v322, %v324
        %v327 = vsel %vm325, %v324, %v322
        %v328 = vsel %vm217, 1, 0
        %v329 = vsel %vm218, 1, 0
        %vm330 = vcmp.eq.s32.totalorder %v328, 1
        %vm331 = vcmp.eq.s32.totalorder %v329, 1
        %v332 = vsel %vm330, %v327, -inf
        %v333 = vsel %vm331, %v326, -inf
        %v336 = vcombine.low %v332, %v333
        %v338 = vmax.f32 %v317, %v336
        %339 = vrot.lane.b32.xlu0 %v317, 16
        %v340 = vpop.permute.xlu0 %339
        %341 = vrot.lane.b32.xlu0 %v319, 16
        %v342 = vpop.permute.xlu0 %341
        %vm343 = vcmp.lt.s32.totalorder %v153, 16
        %v344 = vsel %vm343, %v340, %v342
        %v345 = vsel %vm343, %v342, %v340
        %v346 = vsel %vm225, 1, 0
        %v347 = vsel %vm226, 1, 0
        %vm348 = vcmp.eq.s32.totalorder %v346, 1
        %vm349 = vcmp.eq.s32.totalorder %v347, 1
        %v350 = vsel %vm348, %v345, -inf
        %v351 = vsel %vm349, %v344, -inf
        %v354 = vcombine.low %v350, %v351
        %v356 = vmax.f32 %v338, %v354
        %357 = vrot.lane.b32.xlu0 %v317, 112
        %v358 = vpop.permute.xlu0 %357
        %359 = vrot.lane.b32.xlu0 %v319, 112
        %v360 = vpop.permute.xlu0 %359
        %vm361 = vcmp.lt.s32.totalorder %v153, 112
        %v362 = vsel %vm361, %v358, %v360
        %v363 = vsel %vm361, %v360, %v358
        %v364 = vsel %vm233, 1, 0
        %v365 = vsel %vm234, 1, 0
        %vm366 = vcmp.eq.s32.totalorder %v364, 1
        %vm367 = vcmp.eq.s32.totalorder %v365, 1
        %v368 = vsel %vm366, %v362, -inf
        %v369 = vsel %vm367, %v363, -inf
        %v372 = vcombine.low %v368, %v369
        %v374 = vmax.f32 %v356, %v372
        %375 = vrot.lane.b32.xlu0 %v317, 96
        %v376 = vpop.permute.xlu0 %375
        %377 = vrot.lane.b32.xlu0 %v319, 96
        %v378 = vpop.permute.xlu0 %377
        %vm379 = vcmp.lt.s32.totalorder %v153, 96
        %v380 = vsel %vm379, %v376, %v378
        %v381 = vsel %vm379, %v378, %v376
        %v382 = vsel %vm241, 1, 0
        %v383 = vsel %vm242, 1, 0
        %vm384 = vcmp.eq.s32.totalorder %v382, 1
        %vm385 = vcmp.eq.s32.totalorder %v383, 1
        %v386 = vsel %vm384, %v380, -inf
        %v387 = vsel %vm385, %v381, -inf
        %v390 = vcombine.low %v386, %v387
        %v392 = vmax.f32 %v374, %v390
        %v394 = vcombine.high %v392, %v392
        %396 = vrot.lane.b32.xlu0 %v392, 2
        %v397 = vpop.permute.xlu0 %396
        %398 = vrot.lane.b32.xlu0 %v394, 2
        %v399 = vpop.permute.xlu0 %398
        %v400 = vsel %vm250, %v397, %v399
        %v401 = vsel %vm250, %v399, %v397
        %v402 = vsel %vm255, %v401, -inf
        %v403 = vsel %vm256, %v400, -inf
        %v406 = vcombine.low %v402, %v403
        %v408 = vmax.f32 %v392, %v406
        %409 = vrot.lane.b32.xlu0 %v392, 1
        %v410 = vpop.permute.xlu0 %409
        %411 = vrot.lane.b32.xlu0 %v394, 1
        %v412 = vpop.permute.xlu0 %411
        %v413 = vsel %vm268, %v410, %v412
        %v414 = vsel %vm268, %v412, %v410
        %v415 = vsel %vm273, %v414, -inf
        %v416 = vsel %vm274, %v413, -inf
        %v419 = vcombine.low %v415, %v416
        %v421 = vmax.f32 %v408, %v419
        %422 = vrot.lane.b32.xlu0 %v392, 127
        %v423 = vpop.permute.xlu0 %422
        %424 = vrot.lane.b32.xlu0 %v394, 127
        %v425 = vpop.permute.xlu0 %424
        %v426 = vsel %vm286, %v423, %v425
        %v427 = vsel %vm286, %v425, %v423
        %v428 = vsel %vm291, %v426, -inf
        %v429 = vsel %vm292, %v427, -inf
        %v432 = vcombine.low %v428, %v429
        %v434 = vmax.f32 %v421, %v432
        %435 = vrot.lane.b32.xlu0 %v392, 126
        %v436 = vpop.permute.xlu0 %435
        %437 = vrot.lane.b32.xlu0 %v394, 126
        %v438 = vpop.permute.xlu0 %437
        %v439 = vsel %vm304, %v436, %v438
        %v440 = vsel %vm304, %v438, %v436
        %v441 = vsel %vm309, %v439, -inf
        %v442 = vsel %vm310, %v440, -inf
        %v445 = vcombine.low %v441, %v442
        %v447 = vmax.f32 %v434, %v445
        %v449 = vcombine.high %v447, %v447
        %451 = vrot.lane.b32.xlu0 %v447, 32
        %v452 = vpop.permute.xlu0 %451
        %453 = vrot.lane.b32.xlu0 %v449, 32
        %v454 = vpop.permute.xlu0 %453
        %v455 = vsel %vm325, %v452, %v454
        %v456 = vsel %vm325, %v454, %v452
        %v457 = vsel %vm330, %v456, -inf
        %v458 = vsel %vm331, %v455, -inf
        %v461 = vcombine.low %v457, %v458
        %v463 = vmax.f32 %v447, %v461
        %464 = vrot.lane.b32.xlu0 %v447, 16
        %v465 = vpop.permute.xlu0 %464
        %466 = vrot.lane.b32.xlu0 %v449, 16
        %v467 = vpop.permute.xlu0 %466
        %v468 = vsel %vm343, %v465, %v467
        %v469 = vsel %vm343, %v467, %v465
        %v470 = vsel %vm348, %v469, -inf
        %v471 = vsel %vm349, %v468, -inf
        %v474 = vcombine.low %v470, %v471
        %v476 = vmax.f32 %v463, %v474
        %477 = vrot.lane.b32.xlu0 %v447, 112
        %v478 = vpop.permute.xlu0 %477
        %479 = vrot.lane.b32.xlu0 %v449, 112
        %v480 = vpop.permute.xlu0 %479
        %v481 = vsel %vm361, %v478, %v480
        %v482 = vsel %vm361, %v480, %v478
        %v483 = vsel %vm366, %v481, -inf
        %v484 = vsel %vm367, %v482, -inf
        %v487 = vcombine.low %v483, %v484
        %v489 = vmax.f32 %v476, %v487
        %490 = vrot.lane.b32.xlu0 %v447, 96
        %v491 = vpop.permute.xlu0 %490
        %492 = vrot.lane.b32.xlu0 %v449, 96
        %v493 = vpop.permute.xlu0 %492
        %v494 = vsel %vm379, %v491, %v493
        %v495 = vsel %vm379, %v493, %v491
        %v496 = vsel %vm384, %v494, -inf
        %v497 = vsel %vm385, %v495, -inf
        %v500 = vcombine.low %v496, %v497
        %v502 = vmax.f32 %v489, %v500
        %v504 = vcombine.high %v502, %v502
        %506 = vrot.lane.b32.xlu0 %v502, 2
        %v507 = vpop.permute.xlu0 %506
        %508 = vrot.lane.b32.xlu0 %v504, 2
        %v509 = vpop.permute.xlu0 %508
        %v510 = vsel %vm250, %v507, %v509
        %v511 = vsel %vm250, %v509, %v507
        %v512 = vsel %vm255, %v511, -inf
        %v513 = vsel %vm256, %v510, -inf
        %v516 = vcombine.low %v512, %v513
        %v518 = vmax.f32 %v502, %v516
        %519 = vrot.lane.b32.xlu0 %v502, 1
        %v520 = vpop.permute.xlu0 %519
        %521 = vrot.lane.b32.xlu0 %v504, 1
        %v522 = vpop.permute.xlu0 %521
        %v523 = vsel %vm268, %v520, %v522
        %v524 = vsel %vm268, %v522, %v520
        %v525 = vsel %vm273, %v524, -inf
        %v526 = vsel %vm274, %v523, -inf
        %v529 = vcombine.low %v525, %v526
        %v531 = vmax.f32 %v518, %v529
        %532 = vrot.lane.b32.xlu0 %v502, 127
        %v533 = vpop.permute.xlu0 %532
        %534 = vrot.lane.b32.xlu0 %v504, 127
        %v535 = vpop.permute.xlu0 %534
        %v536 = vsel %vm286, %v533, %v535
        %v537 = vsel %vm286, %v535, %v533
        %v538 = vsel %vm291, %v536, -inf
        %v539 = vsel %vm292, %v537, -inf
        %v542 = vcombine.low %v538, %v539
        %v544 = vmax.f32 %v531, %v542
        %545 = vrot.lane.b32.xlu0 %v502, 126
        %v546 = vpop.permute.xlu0 %545
        %547 = vrot.lane.b32.xlu0 %v504, 126
        %v548 = vpop.permute.xlu0 %547
        %v549 = vsel %vm304, %v546, %v548
        %v550 = vsel %vm304, %v548, %v546
        %v551 = vsel %vm309, %v549, -inf
        %v552 = vsel %vm310, %v550, -inf
        %v555 = vcombine.low %v551, %v552
        %v557 = vmax.f32 %v544, %v555
        %v559 = vcombine.high %v557, %v557
        %561 = vrot.lane.b32.xlu0 %v557, 32
        %v562 = vpop.permute.xlu0 %561
        %563 = vrot.lane.b32.xlu0 %v559, 32
        %v564 = vpop.permute.xlu0 %563
        %v565 = vsel %vm325, %v562, %v564
        %v566 = vsel %vm325, %v564, %v562
        %v567 = vsel %vm330, %v566, -inf
        %v568 = vsel %vm331, %v565, -inf
        %v571 = vcombine.low %v567, %v568
        %v573 = vmax.f32 %v557, %v571
        %574 = vrot.lane.b32.xlu0 %v557, 16
        %v575 = vpop.permute.xlu0 %574
        %576 = vrot.lane.b32.xlu0 %v559, 16
        %v577 = vpop.permute.xlu0 %576
        %v578 = vsel %vm343, %v575, %v577
        %v579 = vsel %vm343, %v577, %v575
        %v580 = vsel %vm348, %v579, -inf
        %v581 = vsel %vm349, %v578, -inf
        %v584 = vcombine.low %v580, %v581
        %v586 = vmax.f32 %v573, %v584
        %587 = vrot.lane.b32.xlu0 %v557, 112
        %v588 = vpop.permute.xlu0 %587
        %589 = vrot.lane.b32.xlu0 %v559, 112
        %v590 = vpop.permute.xlu0 %589
        %v591 = vsel %vm361, %v588, %v590
        %v592 = vsel %vm361, %v590, %v588
        %v593 = vsel %vm366, %v591, -inf
        %v594 = vsel %vm367, %v592, -inf
        %v597 = vcombine.low %v593, %v594
        %v599 = vmax.f32 %v586, %v597
        %600 = vrot.lane.b32.xlu0 %v557, 96
        %v601 = vpop.permute.xlu0 %600
        %602 = vrot.lane.b32.xlu0 %v559, 96
        %v603 = vpop.permute.xlu0 %602
        %v604 = vsel %vm379, %v601, %v603
        %v605 = vsel %vm379, %v603, %v601
        %v606 = vsel %vm384, %v604, -inf
        %v607 = vsel %vm385, %v605, -inf
        %v610 = vcombine.low %v606, %v607
        %v612 = vmax.f32 %v599, %v610
        %613 = vst [vmem:[%s150] sm:$0xff] %v151
        %s614 = scalar_lea.vmem %s150, 8 [#allocation5]
        %615 = vst [vmem:[%s614] sm:$0xff] %v392
        %s616 = scalar_lea.vmem %s150, 16 [#allocation5]
        %617 = vst [vmem:[%s616] sm:$0xff] %v502
        %s618 = scalar_lea.vmem %s150, 24 [#allocation5]
        %619 = vst [vmem:[%s618] sm:$0xff] %v612
        %s620 = sand.u32 %s68, 1
        %s621 = scalar_lea.sflag [#allocation4], %s620
        %s622 = sand.u32 %s68, 1
        %s623 = smul.addr %s622, 32
        %s624 = scalar_lea.vmem [#allocation5], %s623
        // Predicated region
        $region29: #{tpu_custom_call.1} parent=23 // pred_check
          %p625 = pneg %p78
        $region30: #{tpu_custom_call.1} parent=23 // pred_check_branch
          %627 = sbr.rel (%p625) target = $region32
        $region31: #{tpu_custom_call.1} parent=23 // pred_region
          %s629 = ssub.s32 512, 512
          %630 = vsyncadd %s621, %s629
          %s631 = smul.addr %s23, 2
          %s632 = smul.addr %s22, 8
          %s633 = sadd.s32 %s631, %s632
          %s634 = smul.addr %s633, 64
          %s635 = scalar_lea.hbm %s1, %s634
          %s636 = sshll.u32 %s624, 4
          %s637 = int_to_ptr.vmem [resolvable:$true] %s636
          %642 = dma.vmem_to_hbm [thread:$0]  %s637, 512, %s635, %s621, 128, 128, 8
        $region32: #{tpu_custom_call.1} parent=23 // pred_fallthru
          _
      $region24: #{tpu_custom_call.1} parent=5 // pred_fallthru
        _
      %p643 = scmp.le.s32.totalorder 2, %s13
      // Predicated region
      $region33: #{tpu_custom_call.1} parent=5 // pred_check
        %p644 = pneg %p643
      $region34: #{tpu_custom_call.1} parent=5 // pred_check_branch
        %646 = sbr.rel (%p644) target = $region36
      $region35: #{tpu_custom_call.1} parent=5 // pred_region
        %s647 = ssub.s32 %s13, 2
        // Predicated region
        $region37: #{tpu_custom_call.1} parent=35 // pred_check
          %p648 = pneg %p84
        $region38: #{tpu_custom_call.1} parent=35 // pred_check_branch
          %650 = sbr.rel (%p648) target = $region40
        $region39: #{tpu_custom_call.1} parent=35 // pred_region
          %s651 = sand.u32 %s69, 1
          %s652 = scalar_lea.sflag [#allocation4], %s651
          %s653 = sand.u32 %s69, 1
          %s654 = smul.addr %s653, 32
          %s655 = scalar_lea.vmem [#allocation5], %s654
          %656 = dma.done %s652, 512
        $region40: #{tpu_custom_call.1} parent=35 // pred_fallthru
          _
      $region36: #{tpu_custom_call.1} parent=5 // pred_fallthru
        _
    $region6: #{tpu_custom_call.1} parent=1 // loop_footer
      %s17 = sadd.s32 1, %s13
    $region7: #{tpu_custom_call.1} parent=1 // loop_footer_branch
      %12 = sbr.rel target = $region3
    $region8: #{tpu_custom_call.1} parent=1 // loop_exit
      _
    %657 = vsyncpa [#allocation3], 1
    %s658 = scalar_lea.sflag [#allocation3], 1
    %659 = vsyncpa %s658, 1
    %660 = vsyncpa [#allocation4], 1
    %s661 = scalar_lea.sflag [#allocation4], 1
    %662 = vsyncpa %s661, 1

</llo_original>
